<compile_context>
chip_gen: v7x
topology: tpu7x:2x2x1
jax: 0.10.0
libtpu: 0.0.40
codegen_flags: <defaults>
</compile_context>

<pallas_src>
import functools
import math

import jax
import jax.numpy as jnp
import numpy as np
from jax import lax
from jax.experimental import pallas as pl
from jax.experimental.pallas import tpu as pltpu


# contract last axis of both operands: x @ W.T without any transpose
_DN_LAST_LAST = (((1,), (1,)), ((), ()))
# standard row-by-col contraction: p @ v
_DN_STD = (((1,), (0,)), ((), ()))


def _project(x, w, mxu_dtype):
    """x @ w.T on the MXU; optionally feed bf16 operands, f32 accumulation."""
    if mxu_dtype is not None:
        x = x.astype(mxu_dtype)
        w = w.astype(mxu_dtype)
    return lax.dot_general(x, w, _DN_LAST_LAST, preferred_element_type=jnp.float32)


def _attention_body(scale, mxu_dtype, q_ref, k_ref, v_ref,
                    wq_ref, wk_ref, wv_ref, out_ref, mask_ref=None):
    # Projections (no bias).  The 1/sqrt(D) scale is folded into q (Sq*D
    # elements) instead of being applied to the [Sq, Sk] score matrix.
    q = _project(q_ref[...], wq_ref[...], mxu_dtype) * jnp.float32(scale)
    k = _project(k_ref[...], wk_ref[...], mxu_dtype)
    v = _project(v_ref[...], wv_ref[...], mxu_dtype)

    if mxu_dtype is not None:
        q = q.astype(mxu_dtype)
        k = k.astype(mxu_dtype)

    # scores: q @ k.T via dot_general (contract last axes, no XLU transpose)
    sims = lax.dot_general(q, k, _DN_LAST_LAST, preferred_element_type=jnp.float32)

    if mask_ref is not None:
        # masked_fill(mask, -1e9); mask arrives as int8 (nonzero == True)
        sims = jnp.where(mask_ref[...] != 0, jnp.float32(-1e9), sims)

    # softmax over the key axis, kept in f32
    m = jnp.max(sims, axis=-1, keepdims=True)
    p = jnp.exp(sims - m)
    denom = jnp.sum(p, axis=-1, keepdims=True)
    p = p * pl.reciprocal(denom, approx=True)

    if mxu_dtype is not None:
        p = p.astype(mxu_dtype)
        v = v.astype(mxu_dtype)

    out_ref[...] = lax.dot_general(
        p, v, _DN_STD, preferred_element_type=jnp.float32).astype(out_ref.dtype)


def _kernel_nomask(scale, mxu_dtype, q_ref, k_ref, v_ref, wq, wk, wv, out_ref):
    _attention_body(scale, mxu_dtype, q_ref, k_ref, v_ref, wq, wk, wv, out_ref)


def _kernel_masked(scale, mxu_dtype, q_ref, k_ref, v_ref, wq, wk, wv, mask_ref, out_ref):
    _attention_body(scale, mxu_dtype, q_ref, k_ref, v_ref, wq, wk, wv, out_ref,
                    mask_ref=mask_ref)


def _pick_tile_q(sq):
    # Multiples of 32 keep the int8 mask block and f32 q block sublane-legal;
    # fall back to the full extent (always legal) for small / odd seq lengths.
    for t in (512, 256, 128, 64, 32):
        if sq % t == 0:
            return t
    return sq


def attention_pallas(enc_q, enc_k, enc_v, w_q, w_k, w_v, mask=None, mxu_dtype=None):
    """Pallas equivalent of Attention.forward.

    enc_q: [Sq, D], enc_k/enc_v: [Sk, D]
    w_q/w_k/w_v: [D, D] in PyTorch Linear layout ([out_features, in_features])
    mask: optional bool/int [Sq, Sk]; True entries are filled with -1e9.
    mxu_dtype: e.g. jnp.bfloat16 to feed bf16 MXU operands (v6e/v7x); softmax
               and accumulation stay in f32.
    """
    sq, d = enc_q.shape
    sk, _ = enc_k.shape
    scale = 1.0 / math.sqrt(float(d))

    tile_q = _pick_tile_q(sq)
    grid = (sq // tile_q,)

    # Query rows tiled over the grid; K/V encodings and the three weights use
    # constant index_maps so they are DMA'd once and stay VMEM-resident.
    q_spec = pl.BlockSpec((tile_q, d), lambda i: (i, 0))
    kv_spec = pl.BlockSpec((sk, d), lambda i: (0, 0))
    w_spec = pl.BlockSpec((d, d), lambda i: (0, 0))
    out_spec = pl.BlockSpec((tile_q, d), lambda i: (i, 0))

    in_specs = [q_spec, kv_spec, kv_spec, w_spec, w_spec, w_spec]
    args = [enc_q, enc_k, enc_v, w_q, w_k, w_v]

    if mask is None:
        # Trace-time specialization: no mask DMA, no select in the kernel.
        kernel = functools.partial(_kernel_nomask, scale, mxu_dtype)
    else:
        kernel = functools.partial(_kernel_masked, scale, mxu_dtype)
        in_specs.append(pl.BlockSpec((tile_q, sk), lambda i: (i, 0)))
        args.append(mask.astype(jnp.int8))

    # TODO(synk): for large Sk, tile the key axis too and switch to an
    # online-softmax (flash) accumulation so the [tile_q, Sk] score matrix is
    # never materialized; for tiny d_model, batch heads to make the output
    # lane-dense.  Not needed at these shapes.
    return pl.pallas_call(
        kernel,
        out_shape=jax.ShapeDtypeStruct((sq, d), jnp.float32),
        grid_spec=pltpu.PrefetchScalarGridSpec(
            num_scalar_prefetch=0,
            grid=grid,
            in_specs=in_specs,
            out_specs=out_spec,
        ),
        compiler_params=pltpu.CompilerParams(
            dimension_semantics=("parallel",),
            vmem_limit_bytes=64 * 1024 * 1024,
        ),
    )(*args)


def attention_ref(enc_q, enc_k, enc_v, w_q, w_k, w_v, mask=None):
    """Pure-JAX reference mirroring the PyTorch module."""
    q = enc_q @ w_q.T
    k = enc_k @ w_k.T
    v = enc_v @ w_v.T
    sims = q @ k.T
    scaled = sims / jnp.sqrt(jnp.float32(k.shape[1]))
    if mask is not None:
        scaled = jnp.where(mask, -1e9, scaled)
    p = jax.nn.softmax(scaled, axis=1)
    return p @ v


if __name__ == "__main__":
    d_model = 32
    seq = 8

    key = jax.random.PRNGKey(0)
    k_q, k_k, k_v, k_wq, k_wk, k_wv = jax.random.split(key, 6)

    enc_q = jax.random.normal(k_q, (seq, d_model), dtype=jnp.float32)
    enc_k = jax.random.normal(k_k, (seq, d_model), dtype=jnp.float32)
    enc_v = jax.random.normal(k_v, (seq, d_model), dtype=jnp.float32)

    # nn.Linear default init: U(-1/sqrt(in_features), 1/sqrt(in_features))
    bound = 1.0 / math.sqrt(d_model)
    w_q = jax.random.uniform(k_wq, (d_model, d_model), jnp.float32, -bound, bound)
    w_k = jax.random.uniform(k_wk, (d_model, d_model), jnp.float32, -bound, bound)
    w_v = jax.random.uniform(k_wv, (d_model, d_model), jnp.float32, -bound, bound)

    # causal mask (True entries get -1e9), exercising the masked_fill path
    causal_mask = jnp.triu(jnp.ones((seq, seq), dtype=bool), k=1)

    # no-mask case (f32 MXU path)
    out_nomask = attention_pallas(enc_q, enc_k, enc_v, w_q, w_k, w_v, mask=None)
    jax.block_until_ready(out_nomask)
    ref_nomask = attention_ref(enc_q, enc_k, enc_v, w_q, w_k, w_v, mask=None)

    # masked case (f32 MXU path)
    out_mask = attention_pallas(enc_q, enc_k, enc_v, w_q, w_k, w_v, mask=causal_mask)
    jax.block_until_ready(out_mask)
    ref_mask = attention_ref(enc_q, enc_k, enc_v, w_q, w_k, w_v, mask=causal_mask)

    # tolerances account for the EUP approx-reciprocal in the softmax denominator
    np.testing.assert_allclose(np.asarray(out_nomask), np.asarray(ref_nomask),
                               rtol=2e-3, atol=2e-3)
    np.testing.assert_allclose(np.asarray(out_mask), np.asarray(ref_mask),
                               rtol=2e-3, atol=2e-3)

    # bf16 MXU-operand variant (v6e/v7x fast path); loose tolerance for bf16
    out_bf16 = attention_pallas(enc_q, enc_k, enc_v, w_q, w_k, w_v,
                                mask=causal_mask, mxu_dtype=jnp.bfloat16)
    jax.block_until_ready(out_bf16)
    np.testing.assert_allclose(np.asarray(out_bf16), np.asarray(ref_mask),
                               rtol=1e-1, atol=1e-1)

    # larger shape exercising the gridded (tiled-Sq) path
    seq2 = 256
    eq2 = jax.random.normal(k_q, (seq2, d_model), dtype=jnp.float32)
    ek2 = jax.random.normal(k_k, (seq2, d_model), dtype=jnp.float32)
    ev2 = jax.random.normal(k_v, (seq2, d_model), dtype=jnp.float32)
    mask2 = jnp.triu(jnp.ones((seq2, seq2), dtype=bool), k=1)
    out2 = attention_pallas(eq2, ek2, ev2, w_q, w_k, w_v, mask=mask2)
    jax.block_until_ready(out2)
    ref2 = attention_ref(eq2, ek2, ev2, w_q, w_k, w_v, mask=mask2)
    np.testing.assert_allclose(np.asarray(out2), np.asarray(ref2),
                               rtol=2e-3, atol=2e-3)

    print("KERNEL_OK")
</pallas_src>

<mosaic_0001>
module attributes {stable_mosaic.version = 11 : i64} {
  func.func @_kernel_nomask(%arg0: i32, %arg1: memref<8x32xf32, #tpu.memory_space<vmem>>, %arg2: memref<8x32xf32, #tpu.memory_space<vmem>>, %arg3: memref<8x32xf32, #tpu.memory_space<vmem>>, %arg4: memref<32x32xf32, #tpu.memory_space<vmem>>, %arg5: memref<32x32xf32, #tpu.memory_space<vmem>>, %arg6: memref<32x32xf32, #tpu.memory_space<vmem>>, %arg7: memref<8x32xf32, #tpu.memory_space<vmem>>) attributes {dimension_semantics = [#tpu.dimension_semantics<parallel>], iteration_bounds = array<i64: 1>, scalar_prefetch = 0 : i64, scratch_operands = 0 : i64, tpu.core_type = #tpu.core_type<tc>, window_params = [{transform_indices = @transform_0, window_bounds = array<i64: 8, 32>}, {pipeline_mode = #tpu.pipeline_mode<synchronous>, transform_indices = @transform_1, window_bounds = array<i64: 8, 32>}, {pipeline_mode = #tpu.pipeline_mode<synchronous>, transform_indices = @transform_2, window_bounds = array<i64: 8, 32>}, {pipeline_mode = #tpu.pipeline_mode<synchronous>, transform_indices = @transform_3, window_bounds = array<i64: 32, 32>}, {pipeline_mode = #tpu.pipeline_mode<synchronous>, transform_indices = @transform_4, window_bounds = array<i64: 32, 32>}, {pipeline_mode = #tpu.pipeline_mode<synchronous>, transform_indices = @transform_5, window_bounds = array<i64: 32, 32>}, {transform_indices = @transform_6, window_bounds = array<i64: 8, 32>}]} {
    %c0 = arith.constant 0 : index
    %c0_0 = arith.constant 0 : index
    %0 = vector.load %arg1[%c0, %c0_0] : memref<8x32xf32, #tpu.memory_space<vmem>>, vector<8x32xf32>
    %c0_1 = arith.constant 0 : index
    %c0_2 = arith.constant 0 : index
    %1 = vector.load %arg4[%c0_1, %c0_2] : memref<32x32xf32, #tpu.memory_space<vmem>>, vector<32x32xf32>
    %cst = arith.constant dense<0.000000e+00> : vector<8x32xf32>
    %2 = tpu.matmul %0, %1, %cst {dimension_numbers = #tpu.dot_dimension_numbers<[1], [1], [0], [0], [0, 0, 1, 0], [], []>} : vector<8x32xf32>, vector<32x32xf32>, vector<8x32xf32> -> vector<8x32xf32>
    %cst_3 = arith.constant 0.176776692 : f32
    %3 = vector.broadcast %cst_3 : f32 to vector<8x32xf32>
    %4 = arith.mulf %2, %3 : vector<8x32xf32>
    %c0_4 = arith.constant 0 : index
    %c0_5 = arith.constant 0 : index
    %5 = vector.load %arg2[%c0_4, %c0_5] : memref<8x32xf32, #tpu.memory_space<vmem>>, vector<8x32xf32>
    %c0_6 = arith.constant 0 : index
    %c0_7 = arith.constant 0 : index
    %6 = vector.load %arg5[%c0_6, %c0_7] : memref<32x32xf32, #tpu.memory_space<vmem>>, vector<32x32xf32>
    %cst_8 = arith.constant dense<0.000000e+00> : vector<8x32xf32>
    %7 = tpu.matmul %5, %6, %cst_8 {dimension_numbers = #tpu.dot_dimension_numbers<[1], [1], [0], [0], [0, 0, 1, 0], [], []>} : vector<8x32xf32>, vector<32x32xf32>, vector<8x32xf32> -> vector<8x32xf32>
    %c0_9 = arith.constant 0 : index
    %c0_10 = arith.constant 0 : index
    %8 = vector.load %arg3[%c0_9, %c0_10] : memref<8x32xf32, #tpu.memory_space<vmem>>, vector<8x32xf32>
    %c0_11 = arith.constant 0 : index
    %c0_12 = arith.constant 0 : index
    %9 = vector.load %arg6[%c0_11, %c0_12] : memref<32x32xf32, #tpu.memory_space<vmem>>, vector<32x32xf32>
    %cst_13 = arith.constant dense<0.000000e+00> : vector<8x32xf32>
    %10 = tpu.matmul %8, %9, %cst_13 {dimension_numbers = #tpu.dot_dimension_numbers<[1], [1], [0], [0], [0, 0, 1, 0], [], []>} : vector<8x32xf32>, vector<32x32xf32>, vector<8x32xf32> -> vector<8x32xf32>
    %cst_14 = arith.constant dense<0.000000e+00> : vector<8x8xf32>
    %11 = tpu.matmul %4, %7, %cst_14 {dimension_numbers = #tpu.dot_dimension_numbers<[1], [1], [0], [0], [0, 0, 1, 0], [], []>} : vector<8x32xf32>, vector<8x32xf32>, vector<8x8xf32> -> vector<8x8xf32>
    %cst_15 = arith.constant dense<0xFF800000> : vector<8xf32>
    %12 = vector.multi_reduction <maximumf>, %11, %cst_15 [1] : vector<8x8xf32> to vector<8xf32>
    %13 = vector.shape_cast %12 : vector<8xf32> to vector<8x1xf32>
    %14 = vector.broadcast %13 : vector<8x1xf32> to vector<8x8xf32>
    %15 = arith.subf %11, %14 : vector<8x8xf32>
    %16 = math.exp %15 : vector<8x8xf32>
    %cst_16 = arith.constant dense<0.000000e+00> : vector<8xf32>
    %17 = vector.multi_reduction <add>, %16, %cst_16 [1] : vector<8x8xf32> to vector<8xf32>
    %18 = vector.shape_cast %17 : vector<8xf32> to vector<8x1xf32>
    %19 = tpu.reciprocal %18 {approx = true} : vector<8x1xf32> -> vector<8x1xf32>
    %20 = vector.broadcast %19 : vector<8x1xf32> to vector<8x8xf32>
    %21 = arith.mulf %16, %20 : vector<8x8xf32>
    %cst_17 = arith.constant dense<0.000000e+00> : vector<8x32xf32>
    %22 = tpu.matmul %21, %10, %cst_17 {dimension_numbers = #tpu.dot_dimension_numbers<[1], [0], [0], [1], [0, 0, 1, 1], [], []>} : vector<8x8xf32>, vector<8x32xf32>, vector<8x32xf32> -> vector<8x32xf32>
    %c0_18 = arith.constant 0 : index
    %c0_19 = arith.constant 0 : index
    %23 = vector.load %arg7[%c0_18, %c0_19] : memref<8x32xf32, #tpu.memory_space<vmem>>, vector<8x32xf32>
    tpu.vector_store %arg7[%c0_18, %c0_19], %22 {strides = array<i32>} : memref<8x32xf32, #tpu.memory_space<vmem>>, vector<8x32xf32>,
    return
  }
  func.func @transform_0(%arg0: i32) -> (i32, i32) {
    %c0_i32 = arith.constant 0 : i32
    %c0_i32_0 = arith.constant 0 : i32
    return %arg0, %c0_i32 : i32, i32
  }
  func.func @transform_1(%arg0: i32) -> (i32, i32) {
    %c0_i32 = arith.constant 0 : i32
    %c0_i32_0 = arith.constant 0 : i32
    %c0_i32_1 = arith.constant 0 : i32
    return %c0_i32, %c0_i32_0 : i32, i32
  }
  func.func @transform_2(%arg0: i32) -> (i32, i32) {
    %c0_i32 = arith.constant 0 : i32
    %c0_i32_0 = arith.constant 0 : i32
    %c0_i32_1 = arith.constant 0 : i32
    return %c0_i32, %c0_i32_0 : i32, i32
  }
  func.func @transform_3(%arg0: i32) -> (i32, i32) {
    %c0_i32 = arith.constant 0 : i32
    %c0_i32_0 = arith.constant 0 : i32
    %c0_i32_1 = arith.constant 0 : i32
    return %c0_i32, %c0_i32_0 : i32, i32
  }
  func.func @transform_4(%arg0: i32) -> (i32, i32) {
    %c0_i32 = arith.constant 0 : i32
    %c0_i32_0 = arith.constant 0 : i32
    %c0_i32_1 = arith.constant 0 : i32
    return %c0_i32, %c0_i32_0 : i32, i32
  }
  func.func @transform_5(%arg0: i32) -> (i32, i32) {
    %c0_i32 = arith.constant 0 : i32
    %c0_i32_0 = arith.constant 0 : i32
    %c0_i32_1 = arith.constant 0 : i32
    return %c0_i32, %c0_i32_0 : i32, i32
  }
  func.func @transform_6(%arg0: i32) -> (i32, i32) {
    %c0_i32 = arith.constant 0 : i32
    %c0_i32_0 = arith.constant 0 : i32
    return %arg0, %c0_i32 : i32, i32
  }
}

</mosaic_0001>

<llo_original>
// kernel: tpu_custom_call.1
$region0: #{tpu_custom_call.1}
  #allocation0 [shape = 'u32[]', space=smem, size = 0x4, offset = 0x4, fixed_abs, tag = 'smem constant byte address 0x4 - core index']
  #allocation1 [shape = 'u32[144,128]{1,0:T(1,128)}', space=vmem, size = 0x12000, scoped, tag = 'internal scratch']
  %s0 = inlined_call_operand.hbm [shape: f32[8,32], index: 0, kind: input, shape index: {}]
  %s1 = inlined_call_operand.hbm [shape: f32[8,32], index: 1, kind: input, shape index: {}]
  %s2 = inlined_call_operand.hbm [shape: f32[8,32], index: 2, kind: input, shape index: {}]
  %s3 = inlined_call_operand.hbm [shape: f32[32,32], index: 3, kind: input, shape index: {}]
  %s4 = inlined_call_operand.hbm [shape: f32[32,32], index: 4, kind: input, shape index: {}]
  %s5 = inlined_call_operand.hbm [shape: f32[32,32], index: 5, kind: input, shape index: {}]
  %s6 = inlined_call_operand.hbm [shape: f32[8,32], index: 6, kind: output, shape index: {}]
  %s7 = sld [smem:[#allocation0]]
  $region58: #{tpu_custom_call.1} parent=0
    _
  %s9 = ssub.s32 1, %s7
  %s10 = scalar_select 0, %s9, %s7
  $region1: #{tpu_custom_call.1} parent=0
    #allocation2 [shape = 'u8[4096]{0}', space=vmem, size = 0x1000, scoped, tag = 'input window, operand 0, single buffered']
    #allocation3 [shape = 's32[1]{0}', space=sflag, size = 0x4, scoped, tag = 'scoped memory for tpu_custom_call.1']
    #allocation4 [shape = 's32[1]{0}', space=sflag, size = 0x4, scoped, tag = 'scoped memory for tpu_custom_call.1']
    #allocation5 [shape = 'u8[4096]{0}', space=vmem, size = 0x1000, scoped, tag = 'input window, operand 1, single buffered']
    #allocation6 [shape = 's32[1]{0}', space=sflag, size = 0x4, scoped, tag = 'scoped memory for tpu_custom_call.1']
    #allocation7 [shape = 'u8[4096]{0}', space=vmem, size = 0x1000, scoped, tag = 'input window, operand 2, single buffered']
    #allocation8 [shape = 'u8[16384]{0}', space=vmem, size = 0x4000, scoped, tag = 'input window, operand 3, single buffered']
    #allocation9 [shape = 's32[1]{0}', space=sflag, size = 0x4, scoped, tag = 'scoped memory for tpu_custom_call.1']
    #allocation10 [shape = 'u8[16384]{0}', space=vmem, size = 0x4000, scoped, tag = 'input window, operand 4, single buffered']
    #allocation11 [shape = 'u8[16384]{0}', space=vmem, size = 0x4000, scoped, tag = 'input window, operand 5, single buffered']
    #allocation12 [shape = 's32[1]{0}', space=sflag, size = 0x4, scoped, tag = 'scoped memory for tpu_custom_call.1']
    #allocation13 [shape = 'u8[4096]{0}', space=vmem, size = 0x1000, scoped, tag = 'output window, operand 0, single buffered']
    %11 = vsyncpa [#allocation3], 0
    %12 = vsyncpa [#allocation6], 0
    %13 = vsyncpa [#allocation9], 0
    %14 = vsyncpa [#allocation12], 0
    %15 = vsyncpa [#allocation4], 0
    // Predicated region
    $region2: #{tpu_custom_call.1} parent=1 // pred_check
      _
    $region3: #{tpu_custom_call.1} parent=1 // pred_check_branch
      %17 = sbr.rel (0) target = $region5
    $region4: #{tpu_custom_call.1} parent=1 // pred_region
      %s19 = ssub.s32 128, 128
      %20 = vsyncadd [#allocation3], %s19
      %s22 = sshll.u32 [#allocation2], 4
      %s23 = int_to_ptr.vmem [resolvable:$true] %s22
      %25 = dma.hbm_to_vmem [thread:$0]  %s0, 128, %s23, [#allocation3]
    $region5: #{tpu_custom_call.1} parent=1 // pred_fallthru
      _
    // Predicated region
    $region6: #{tpu_custom_call.1} parent=1 // pred_check
      _
    $region7: #{tpu_custom_call.1} parent=1 // pred_check_branch
      %27 = sbr.rel (0) target = $region9
    $region8: #{tpu_custom_call.1} parent=1 // pred_region
      %s29 = ssub.s32 128, 128
      %30 = vsyncadd [#allocation6], %s29
      %s32 = sshll.u32 [#allocation5], 4
      %s33 = int_to_ptr.vmem [resolvable:$true] %s32
      %35 = dma.hbm_to_vmem [thread:$0]  %s1, 128, %s33, [#allocation6]
    $region9: #{tpu_custom_call.1} parent=1 // pred_fallthru
      _
    // Predicated region
    $region10: #{tpu_custom_call.1} parent=1 // pred_check
      _
    $region11: #{tpu_custom_call.1} parent=1 // pred_check_branch
      %37 = sbr.rel (0) target = $region13
    $region12: #{tpu_custom_call.1} parent=1 // pred_region
      %s39 = ssub.s32 128, 128
      %40 = vsyncadd [#allocation6], %s39
      %s42 = sshll.u32 [#allocation7], 4
      %s43 = int_to_ptr.vmem [resolvable:$true] %s42
      %45 = dma.hbm_to_vmem [thread:$0]  %s2, 128, %s43, [#allocation6]
    $region13: #{tpu_custom_call.1} parent=1 // pred_fallthru
      _
    // Predicated region
    $region14: #{tpu_custom_call.1} parent=1 // pred_check
      _
    $region15: #{tpu_custom_call.1} parent=1 // pred_check_branch
      %47 = sbr.rel (0) target = $region17
    $region16: #{tpu_custom_call.1} parent=1 // pred_region
      %s49 = ssub.s32 512, 512
      %50 = vsyncadd [#allocation9], %s49
      %s51 = sshll.u32 [#allocation8], 4
      %s52 = int_to_ptr.vmem [resolvable:$true] %s51
      %57 = dma.hbm_to_vmem [thread:$0]  %s3, 512, %s52, [#allocation9], 128, 128, 8
    $region17: #{tpu_custom_call.1} parent=1 // pred_fallthru
      _
    // Predicated region
    $region18: #{tpu_custom_call.1} parent=1 // pred_check
      _
    $region19: #{tpu_custom_call.1} parent=1 // pred_check_branch
      %59 = sbr.rel (0) target = $region21
    $region20: #{tpu_custom_call.1} parent=1 // pred_region
      %s61 = ssub.s32 512, 512
      %62 = vsyncadd [#allocation9], %s61
      %s63 = sshll.u32 [#allocation10], 4
      %s64 = int_to_ptr.vmem [resolvable:$true] %s63
      %69 = dma.hbm_to_vmem [thread:$0]  %s4, 512, %s64, [#allocation9], 128, 128, 8
    $region21: #{tpu_custom_call.1} parent=1 // pred_fallthru
      _
    // Predicated region
    $region22: #{tpu_custom_call.1} parent=1 // pred_check
      _
    $region23: #{tpu_custom_call.1} parent=1 // pred_check_branch
      %71 = sbr.rel (0) target = $region25
    $region24: #{tpu_custom_call.1} parent=1 // pred_region
      %s73 = ssub.s32 512, 512
      %74 = vsyncadd [#allocation12], %s73
      %s75 = sshll.u32 [#allocation11], 4
      %s76 = int_to_ptr.vmem [resolvable:$true] %s75
      %81 = dma.hbm_to_vmem [thread:$0]  %s5, 512, %s76, [#allocation12], 128, 128, 8
    $region25: #{tpu_custom_call.1} parent=1 // pred_fallthru
      _
    // Predicated region
    $region26: #{tpu_custom_call.1} parent=1 // pred_check
      _
    $region27: #{tpu_custom_call.1} parent=1 // pred_check_branch
      %83 = sbr.rel (0) target = $region29
    $region28: #{tpu_custom_call.1} parent=1 // pred_region
      %84 = dma.done [#allocation3], 128
    $region29: #{tpu_custom_call.1} parent=1 // pred_fallthru
      _
    // Predicated region
    $region30: #{tpu_custom_call.1} parent=1 // pred_check
      _
    $region31: #{tpu_custom_call.1} parent=1 // pred_check_branch
      %86 = sbr.rel (0) target = $region33
    $region32: #{tpu_custom_call.1} parent=1 // pred_region
      %87 = dma.done [#allocation6], 128
    $region33: #{tpu_custom_call.1} parent=1 // pred_fallthru
      _
    // Predicated region
    $region34: #{tpu_custom_call.1} parent=1 // pred_check
      _
    $region35: #{tpu_custom_call.1} parent=1 // pred_check_branch
      %89 = sbr.rel (0) target = $region37
    $region36: #{tpu_custom_call.1} parent=1 // pred_region
      %90 = dma.done [#allocation6], 128
    $region37: #{tpu_custom_call.1} parent=1 // pred_fallthru
      _
    // Predicated region
    $region38: #{tpu_custom_call.1} parent=1 // pred_check
      _
    $region39: #{tpu_custom_call.1} parent=1 // pred_check_branch
      %92 = sbr.rel (0) target = $region41
    $region40: #{tpu_custom_call.1} parent=1 // pred_region
      %93 = dma.done [#allocation9], 512
    $region41: #{tpu_custom_call.1} parent=1 // pred_fallthru
      _
    // Predicated region
    $region42: #{tpu_custom_call.1} parent=1 // pred_check
      _
    $region43: #{tpu_custom_call.1} parent=1 // pred_check_branch
      %95 = sbr.rel (0) target = $region45
    $region44: #{tpu_custom_call.1} parent=1 // pred_region
      %96 = dma.done [#allocation9], 512
    $region45: #{tpu_custom_call.1} parent=1 // pred_fallthru
      _
    // Predicated region
    $region46: #{tpu_custom_call.1} parent=1 // pred_check
      _
    $region47: #{tpu_custom_call.1} parent=1 // pred_check_branch
      %98 = sbr.rel (0) target = $region49
    $region48: #{tpu_custom_call.1} parent=1 // pred_region
      %99 = dma.done [#allocation12], 512
    $region49: #{tpu_custom_call.1} parent=1 // pred_fallthru
      _
    %v100 = vld [vmem:[#allocation2] sm:$0xff]
    %v101 = vld [vmem:[#allocation8] sm:$0xff]
    %v102 = vld [vmem:[#allocation8 + $0x8] sm:$0xff]
    %v103 = vld [vmem:[#allocation8 + $0x10] sm:$0xff]
    %v104 = vld [vmem:[#allocation8 + $0x18] sm:$0xff]
    %vm105 = vcmask 261120
    %v107 = vsel %vm105, %v100, 0
    %v110 = vsel %vm105, %v101, 0
    %v113 = vsel %vm105, %v102, 0
    %v116 = vsel %vm105, %v103, 0
    %v119 = vsel %vm105, %v104, 0
    %121 = vmatprep.subr.mxu0 0.0
    %122 = vmatpush1.xpose.msra.mxu0 %v110
    %123 = vmatprep.subr.mxu0 0.0
    %124 = vmatpush1.xpose.msra.mxu0 %v113
    %125 = vmatprep.subr.mxu0 0.0
    %126 = vmatpush1.xpose.msra.mxu0 %v116
    %127 = vmatprep.subr.mxu0 0.0
    %128 = vmatpush1.xpose.msra.mxu0 %v119
    %129 = vmatprep.subr.mxu0 0.0
    %130 = vmatpush1.xpose.msra.mxu0 0.0
    %131 = vmatprep.subr.mxu0 0.0
    %132 = vmatpush1.xpose.msra.mxu0 0.0
    %133 = vmatprep.subr.mxu0 0.0
    %134 = vmatpush1.xpose.msra.mxu0 0.0
    %135 = vmatprep.subr.mxu0 0.0
    %136 = vmatpush1.xpose.msra.mxu0 0.0
    %137 = vmatprep.subr.mxu0 0.0
    %138 = vmatpush1.xpose.msra.mxu0 0.0
    %139 = vmatprep.subr.mxu0 0.0
    %140 = vmatpush1.xpose.msra.mxu0 0.0
    %141 = vmatprep.subr.mxu0 0.0
    %142 = vmatpush1.xpose.msra.mxu0 0.0
    %143 = vmatprep.subr.mxu0 0.0
    %144 = vmatpush1.xpose.msra.mxu0 0.0
    %145 = vmatprep.subr.mxu0 0.0
    %146 = vmatpush1.xpose.msra.mxu0 0.0
    %147 = vmatprep.subr.mxu0 0.0
    %148 = vmatpush1.xpose.msra.mxu0 0.0
    %149 = vmatprep.subr.mxu0 0.0
    %150 = vmatpush1.xpose.msra.mxu0 0.0
    %151 = vmatprep.subr.mxu0 0.0
    %152 = vmatpush1.xpose.msra.mxu0 0.0
    %153 = vmatprep.subr.mxu0 0.0
    %154 = vmatpush1.xpose.msra.mxu0 0.0
    %155 = vmatprep.subr.mxu0 0.0
    %156 = vmatpush1.xpose.msra.mxu0 0.0
    %157 = vmatprep.subr.mxu0 0.0
    %158 = vmatpush1.xpose.msra.mxu0 0.0
    %159 = vmatprep.subr.mxu0 0.0
    %160 = vmatpush1.xpose.msra.mxu0 0.0
    %161 = vmatprep.subr.mxu0 0.0
    %162 = vmatpush1.xpose.msra.mxu0 0.0
    %163 = vmatprep.subr.mxu0 0.0
    %164 = vmatpush1.xpose.msra.mxu0 0.0
    %165 = vmatprep.subr.mxu0 0.0
    %166 = vmatpush1.xpose.msra.mxu0 0.0
    %167 = vmatprep.subr.mxu0 0.0
    %168 = vmatpush1.xpose.msra.mxu0 0.0
    %169 = vmatprep.subr.mxu0 0.0
    %170 = vmatpush1.xpose.msra.mxu0 0.0
    %171 = vmatprep.subr.mxu0 0.0
    %172 = vmatpush1.xpose.msra.mxu0 0.0
    %173 = vmatprep.subr.mxu0 0.0
    %174 = vmatpush1.xpose.msra.mxu0 0.0
    %175 = vmatprep.subr.mxu0 0.0
    %176 = vmatpush1.xpose.msra.mxu0 0.0
    %177 = vmatprep.subr.mxu0 0.0
    %178 = vmatpush1.xpose.msra.mxu0 0.0
    %179 = vmatprep.subr.mxu0 0.0
    %180 = vmatpush1.xpose.msra.mxu0 0.0
    %181 = vmatprep.subr.mxu0 0.0
    %182 = vmatpush1.xpose.msra.mxu0 0.0
    %183 = vmatprep.subr.mxu0 0.0
    %184 = vmatpush1.xpose.msra.mxu0 0.0
    %185 = vmatprep.mubr.f32.mxu0 0.0
    %186 = vmatmul.mubr.f32.gmra.mrb[0].mxu0 %v107
    %v187 = vpop.f32.mrb[0].mxu0
    %v188 = vadd.f32 0.0, %v187
    %v189 = vpop.f32.mrb[0].mxu0
    %190 = vdwg.mxu0
    %v191 = vmul.f32 %v188, 0.17677669
    %v192 = vld [vmem:[#allocation5] sm:$0xff]
    %v193 = vld [vmem:[#allocation10] sm:$0xff]
    %v194 = vld [vmem:[#allocation10 + $0x8] sm:$0xff]
    %v195 = vld [vmem:[#allocation10 + $0x10] sm:$0xff]
    %v196 = vld [vmem:[#allocation10 + $0x18] sm:$0xff]
    %v198 = vsel %vm105, %v192, 0
    %v201 = vsel %vm105, %v193, 0
    %v204 = vsel %vm105, %v194, 0
    %v207 = vsel %vm105, %v195, 0
    %v210 = vsel %vm105, %v196, 0
    %212 = vmatprep.subr.mxu0 0.0
    %213 = vmatpush1.xpose.msra.mxu0 %v201
    %214 = vmatprep.subr.mxu0 0.0
    %215 = vmatpush1.xpose.msra.mxu0 %v204
    %216 = vmatprep.subr.mxu0 0.0
    %217 = vmatpush1.xpose.msra.mxu0 %v207
    %218 = vmatprep.subr.mxu0 0.0
    %219 = vmatpush1.xpose.msra.mxu0 %v210
    %220 = vmatprep.subr.mxu0 0.0
    %221 = vmatpush1.xpose.msra.mxu0 0.0
    %222 = vmatprep.subr.mxu0 0.0
    %223 = vmatpush1.xpose.msra.mxu0 0.0
    %224 = vmatprep.subr.mxu0 0.0
    %225 = vmatpush1.xpose.msra.mxu0 0.0
    %226 = vmatprep.subr.mxu0 0.0
    %227 = vmatpush1.xpose.msra.mxu0 0.0
    %228 = vmatprep.subr.mxu0 0.0
    %229 = vmatpush1.xpose.msra.mxu0 0.0
    %230 = vmatprep.subr.mxu0 0.0
    %231 = vmatpush1.xpose.msra.mxu0 0.0
    %232 = vmatprep.subr.mxu0 0.0
    %233 = vmatpush1.xpose.msra.mxu0 0.0
    %234 = vmatprep.subr.mxu0 0.0
    %235 = vmatpush1.xpose.msra.mxu0 0.0
    %236 = vmatprep.subr.mxu0 0.0
    %237 = vmatpush1.xpose.msra.mxu0 0.0
    %238 = vmatprep.subr.mxu0 0.0
    %239 = vmatpush1.xpose.msra.mxu0 0.0
    %240 = vmatprep.subr.mxu0 0.0
    %241 = vmatpush1.xpose.msra.mxu0 0.0
    %242 = vmatprep.subr.mxu0 0.0
    %243 = vmatpush1.xpose.msra.mxu0 0.0
    %244 = vmatprep.subr.mxu0 0.0
    %245 = vmatpush1.xpose.msra.mxu0 0.0
    %246 = vmatprep.subr.mxu0 0.0
    %247 = vmatpush1.xpose.msra.mxu0 0.0
    %248 = vmatprep.subr.mxu0 0.0
    %249 = vmatpush1.xpose.msra.mxu0 0.0
    %250 = vmatprep.subr.mxu0 0.0
    %251 = vmatpush1.xpose.msra.mxu0 0.0
    %252 = vmatprep.subr.mxu0 0.0
    %253 = vmatpush1.xpose.msra.mxu0 0.0
    %254 = vmatprep.subr.mxu0 0.0
    %255 = vmatpush1.xpose.msra.mxu0 0.0
    %256 = vmatprep.subr.mxu0 0.0
    %257 = vmatpush1.xpose.msra.mxu0 0.0
    %258 = vmatprep.subr.mxu0 0.0
    %259 = vmatpush1.xpose.msra.mxu0 0.0
    %260 = vmatprep.subr.mxu0 0.0
    %261 = vmatpush1.xpose.msra.mxu0 0.0
    %262 = vmatprep.subr.mxu0 0.0
    %263 = vmatpush1.xpose.msra.mxu0 0.0
    %264 = vmatprep.subr.mxu0 0.0
    %265 = vmatpush1.xpose.msra.mxu0 0.0
    %266 = vmatprep.subr.mxu0 0.0
    %267 = vmatpush1.xpose.msra.mxu0 0.0
    %268 = vmatprep.subr.mxu0 0.0
    %269 = vmatpush1.xpose.msra.mxu0 0.0
    %270 = vmatprep.subr.mxu0 0.0
    %271 = vmatpush1.xpose.msra.mxu0 0.0
    %272 = vmatprep.subr.mxu0 0.0
    %273 = vmatpush1.xpose.msra.mxu0 0.0
    %274 = vmatprep.subr.mxu0 0.0
    %275 = vmatpush1.xpose.msra.mxu0 0.0
    %276 = vmatprep.mubr.f32.mxu0 0.0
    %277 = vmatmul.mubr.f32.gmra.mrb[0].mxu0 %v198
    %v278 = vpop.f32.mrb[0].mxu0
    %v279 = vadd.f32 0.0, %v278
    %v280 = vpop.f32.mrb[0].mxu0
    %281 = vdwg.mxu0
    %v282 = vld [vmem:[#allocation7] sm:$0xff]
    %v283 = vld [vmem:[#allocation11] sm:$0xff]
    %v284 = vld [vmem:[#allocation11 + $0x8] sm:$0xff]
    %v285 = vld [vmem:[#allocation11 + $0x10] sm:$0xff]
    %v286 = vld [vmem:[#allocation11 + $0x18] sm:$0xff]
    %v288 = vsel %vm105, %v282, 0
    %v291 = vsel %vm105, %v283, 0
    %v294 = vsel %vm105, %v284, 0
    %v297 = vsel %vm105, %v285, 0
    %v300 = vsel %vm105, %v286, 0
    %302 = vmatprep.subr.mxu0 0.0
    %303 = vmatpush1.xpose.msra.mxu0 %v291
    %304 = vmatprep.subr.mxu0 0.0
    %305 = vmatpush1.xpose.msra.mxu0 %v294
    %306 = vmatprep.subr.mxu0 0.0
    %307 = vmatpush1.xpose.msra.mxu0 %v297
    %308 = vmatprep.subr.mxu0 0.0
    %309 = vmatpush1.xpose.msra.mxu0 %v300
    %310 = vmatprep.subr.mxu0 0.0
    %311 = vmatpush1.xpose.msra.mxu0 0.0
    %312 = vmatprep.subr.mxu0 0.0
    %313 = vmatpush1.xpose.msra.mxu0 0.0
    %314 = vmatprep.subr.mxu0 0.0
    %315 = vmatpush1.xpose.msra.mxu0 0.0
    %316 = vmatprep.subr.mxu0 0.0
    %317 = vmatpush1.xpose.msra.mxu0 0.0
    %318 = vmatprep.subr.mxu0 0.0
    %319 = vmatpush1.xpose.msra.mxu0 0.0
    %320 = vmatprep.subr.mxu0 0.0
    %321 = vmatpush1.xpose.msra.mxu0 0.0
    %322 = vmatprep.subr.mxu0 0.0
    %323 = vmatpush1.xpose.msra.mxu0 0.0
    %324 = vmatprep.subr.mxu0 0.0
    %325 = vmatpush1.xpose.msra.mxu0 0.0
    %326 = vmatprep.subr.mxu0 0.0
    %327 = vmatpush1.xpose.msra.mxu0 0.0
    %328 = vmatprep.subr.mxu0 0.0
    %329 = vmatpush1.xpose.msra.mxu0 0.0
    %330 = vmatprep.subr.mxu0 0.0
    %331 = vmatpush1.xpose.msra.mxu0 0.0
    %332 = vmatprep.subr.mxu0 0.0
    %333 = vmatpush1.xpose.msra.mxu0 0.0
    %334 = vmatprep.subr.mxu0 0.0
    %335 = vmatpush1.xpose.msra.mxu0 0.0
    %336 = vmatprep.subr.mxu0 0.0
    %337 = vmatpush1.xpose.msra.mxu0 0.0
    %338 = vmatprep.subr.mxu0 0.0
    %339 = vmatpush1.xpose.msra.mxu0 0.0
    %340 = vmatprep.subr.mxu0 0.0
    %341 = vmatpush1.xpose.msra.mxu0 0.0
    %342 = vmatprep.subr.mxu0 0.0
    %343 = vmatpush1.xpose.msra.mxu0 0.0
    %344 = vmatprep.subr.mxu0 0.0
    %345 = vmatpush1.xpose.msra.mxu0 0.0
    %346 = vmatprep.subr.mxu0 0.0
    %347 = vmatpush1.xpose.msra.mxu0 0.0
    %348 = vmatprep.subr.mxu0 0.0
    %349 = vmatpush1.xpose.msra.mxu0 0.0
    %350 = vmatprep.subr.mxu0 0.0
    %351 = vmatpush1.xpose.msra.mxu0 0.0
    %352 = vmatprep.subr.mxu0 0.0
    %353 = vmatpush1.xpose.msra.mxu0 0.0
    %354 = vmatprep.subr.mxu0 0.0
    %355 = vmatpush1.xpose.msra.mxu0 0.0
    %356 = vmatprep.subr.mxu0 0.0
    %357 = vmatpush1.xpose.msra.mxu0 0.0
    %358 = vmatprep.subr.mxu0 0.0
    %359 = vmatpush1.xpose.msra.mxu0 0.0
    %360 = vmatprep.subr.mxu0 0.0
    %361 = vmatpush1.xpose.msra.mxu0 0.0
    %362 = vmatprep.subr.mxu0 0.0
    %363 = vmatpush1.xpose.msra.mxu0 0.0
    %364 = vmatprep.subr.mxu0 0.0
    %365 = vmatpush1.xpose.msra.mxu0 0.0
    %366 = vmatprep.mubr.f32.mxu0 0.0
    %367 = vmatmul.mubr.f32.gmra.mrb[0].mxu0 %v288
    %v368 = vpop.f32.mrb[0].mxu0
    %v369 = vadd.f32 0.0, %v368
    %v370 = vpop.f32.mrb[0].mxu0
    %371 = vdwg.mxu0
    %v373 = vsel %vm105, %v191, 0
    %v376 = vsel %vm105, %v279, 0
    %378 = vmatprep.subr.mxu0 0.0
    %379 = vmatpush1.xpose.msra.mxu0 %v376
    %380 = vmatprep.subr.mxu0 0.0
    %381 = vmatpush1.xpose.msra.mxu0 0.0
    %382 = vmatprep.subr.mxu0 0.0
    %383 = vmatpush1.xpose.msra.mxu0 0.0
    %384 = vmatprep.subr.mxu0 0.0
    %385 = vmatpush1.xpose.msra.mxu0 0.0
    %386 = vmatprep.subr.mxu0 0.0
    %387 = vmatpush1.xpose.msra.mxu0 0.0
    %388 = vmatprep.subr.mxu0 0.0
    %389 = vmatpush1.xpose.msra.mxu0 0.0
    %390 = vmatprep.subr.mxu0 0.0
    %391 = vmatpush1.xpose.msra.mxu0 0.0
    %392 = vmatprep.subr.mxu0 0.0
    %393 = vmatpush1.xpose.msra.mxu0 0.0
    %394 = vmatprep.subr.mxu0 0.0
    %395 = vmatpush1.xpose.msra.mxu0 0.0
    %396 = vmatprep.subr.mxu0 0.0
    %397 = vmatpush1.xpose.msra.mxu0 0.0
    %398 = vmatprep.subr.mxu0 0.0
    %399 = vmatpush1.xpose.msra.mxu0 0.0
    %400 = vmatprep.subr.mxu0 0.0
    %401 = vmatpush1.xpose.msra.mxu0 0.0
    %402 = vmatprep.subr.mxu0 0.0
    %403 = vmatpush1.xpose.msra.mxu0 0.0
    %404 = vmatprep.subr.mxu0 0.0
    %405 = vmatpush1.xpose.msra.mxu0 0.0
    %406 = vmatprep.subr.mxu0 0.0
    %407 = vmatpush1.xpose.msra.mxu0 0.0
    %408 = vmatprep.subr.mxu0 0.0
    %409 = vmatpush1.xpose.msra.mxu0 0.0
    %410 = vmatprep.subr.mxu0 0.0
    %411 = vmatpush1.xpose.msra.mxu0 0.0
    %412 = vmatprep.subr.mxu0 0.0
    %413 = vmatpush1.xpose.msra.mxu0 0.0
    %414 = vmatprep.subr.mxu0 0.0
    %415 = vmatpush1.xpose.msra.mxu0 0.0
    %416 = vmatprep.subr.mxu0 0.0
    %417 = vmatpush1.xpose.msra.mxu0 0.0
    %418 = vmatprep.subr.mxu0 0.0
    %419 = vmatpush1.xpose.msra.mxu0 0.0
    %420 = vmatprep.subr.mxu0 0.0
    %421 = vmatpush1.xpose.msra.mxu0 0.0
    %422 = vmatprep.subr.mxu0 0.0
    %423 = vmatpush1.xpose.msra.mxu0 0.0
    %424 = vmatprep.subr.mxu0 0.0
    %425 = vmatpush1.xpose.msra.mxu0 0.0
    %426 = vmatprep.subr.mxu0 0.0
    %427 = vmatpush1.xpose.msra.mxu0 0.0
    %428 = vmatprep.subr.mxu0 0.0
    %429 = vmatpush1.xpose.msra.mxu0 0.0
    %430 = vmatprep.subr.mxu0 0.0
    %431 = vmatpush1.xpose.msra.mxu0 0.0
    %432 = vmatprep.subr.mxu0 0.0
    %433 = vmatpush1.xpose.msra.mxu0 0.0
    %434 = vmatprep.subr.mxu0 0.0
    %435 = vmatpush1.xpose.msra.mxu0 0.0
    %436 = vmatprep.subr.mxu0 0.0
    %437 = vmatpush1.xpose.msra.mxu0 0.0
    %438 = vmatprep.subr.mxu0 0.0
    %439 = vmatpush1.xpose.msra.mxu0 0.0
    %440 = vmatprep.subr.mxu0 0.0
    %441 = vmatpush1.xpose.msra.mxu0 0.0
    %442 = vmatprep.mubr.f32.mxu0 0.0
    %443 = vmatmul.mubr.f32.gmra.mrb[0].mxu0 %v373
    %v444 = vpop.f32.mrb[0].mxu0
    %v445 = vadd.f32 0.0, %v444
    %v446 = vpop.f32.mrb[0].mxu0
    %447 = vdwg.mxu0
    %vm448 = vcmask 64512
    %v449 = vsel %vm448, %v445, -inf
    %450 = vmax.xlane.f32.xlu0 %v449
    %v451 = vpop.xlane.xlu0 %450
    %v452 = vsub.f32 %v445, %v451
    %v453 = vmul.f32 %v452, 1.442695
    %v454 = vpow.pop %v453
    %v455 = vsel %vm448, %v454, 0.0
    %456 = vadd.xlane.f32.xlu0 %v455
    %v457 = vpop.xlane.xlu0 %456
    %v458 = vrcp.pop %v457
    %v459 = vmul.f32 %v454, %v458
    %v461 = vsel %vm448, %v459, 0
    %463 = vmatprep.subr.mxu0 0.0
    %464 = vmatpush1.msra.mxu0 %v369
    %465 = vmatprep.subr.mxu0 0.0
    %466 = vmatpush1.msra.mxu0 0.0
    %467 = vmatprep.subr.mxu0 0.0
    %468 = vmatpush1.msra.mxu0 0.0
    %469 = vmatprep.subr.mxu0 0.0
    %470 = vmatpush1.msra.mxu0 0.0
    %471 = vmatprep.subr.mxu0 0.0
    %472 = vmatpush1.msra.mxu0 0.0
    %473 = vmatprep.subr.mxu0 0.0
    %474 = vmatpush1.msra.mxu0 0.0
    %475 = vmatprep.subr.mxu0 0.0
    %476 = vmatpush1.msra.mxu0 0.0
    %477 = vmatprep.subr.mxu0 0.0
    %478 = vmatpush1.msra.mxu0 0.0
    %479 = vmatprep.subr.mxu0 0.0
    %480 = vmatpush1.msra.mxu0 0.0
    %481 = vmatprep.subr.mxu0 0.0
    %482 = vmatpush1.msra.mxu0 0.0
    %483 = vmatprep.subr.mxu0 0.0
    %484 = vmatpush1.msra.mxu0 0.0
    %485 = vmatprep.subr.mxu0 0.0
    %486 = vmatpush1.msra.mxu0 0.0
    %487 = vmatprep.subr.mxu0 0.0
    %488 = vmatpush1.msra.mxu0 0.0
    %489 = vmatprep.subr.mxu0 0.0
    %490 = vmatpush1.msra.mxu0 0.0
    %491 = vmatprep.subr.mxu0 0.0
    %492 = vmatpush1.msra.mxu0 0.0
    %493 = vmatprep.subr.mxu0 0.0
    %494 = vmatpush1.msra.mxu0 0.0
    %495 = vmatprep.subr.mxu0 0.0
    %496 = vmatpush1.msra.mxu0 0.0
    %497 = vmatprep.subr.mxu0 0.0
    %498 = vmatpush1.msra.mxu0 0.0
    %499 = vmatprep.subr.mxu0 0.0
    %500 = vmatpush1.msra.mxu0 0.0
    %501 = vmatprep.subr.mxu0 0.0
    %502 = vmatpush1.msra.mxu0 0.0
    %503 = vmatprep.subr.mxu0 0.0
    %504 = vmatpush1.msra.mxu0 0.0
    %505 = vmatprep.subr.mxu0 0.0
    %506 = vmatpush1.msra.mxu0 0.0
    %507 = vmatprep.subr.mxu0 0.0
    %508 = vmatpush1.msra.mxu0 0.0
    %509 = vmatprep.subr.mxu0 0.0
    %510 = vmatpush1.msra.mxu0 0.0
    %511 = vmatprep.subr.mxu0 0.0
    %512 = vmatpush1.msra.mxu0 0.0
    %513 = vmatprep.subr.mxu0 0.0
    %514 = vmatpush1.msra.mxu0 0.0
    %515 = vmatprep.subr.mxu0 0.0
    %516 = vmatpush1.msra.mxu0 0.0
    %517 = vmatprep.subr.mxu0 0.0
    %518 = vmatpush1.msra.mxu0 0.0
    %519 = vmatprep.subr.mxu0 0.0
    %520 = vmatpush1.msra.mxu0 0.0
    %521 = vmatprep.subr.mxu0 0.0
    %522 = vmatpush1.msra.mxu0 0.0
    %523 = vmatprep.subr.mxu0 0.0
    %524 = vmatpush1.msra.mxu0 0.0
    %525 = vmatprep.subr.mxu0 0.0
    %526 = vmatpush1.msra.mxu0 0.0
    %527 = vmatprep.mubr.f32.mxu0 0.0
    %528 = vmatmul.mubr.f32.gmra.mrb[0].mxu0 %v461
    %v529 = vpop.f32.mrb[0].mxu0
    %v530 = vadd.f32 0.0, %v529
    %v531 = vpop.f32.mrb[0].mxu0
    %532 = vdwg.mxu0
    %533 = vst.msk [vmem:[#allocation13] sm:$0xff] %vm105, %v530
    // Predicated region
    $region50: #{tpu_custom_call.1} parent=1 // pred_check
      _
    $region51: #{tpu_custom_call.1} parent=1 // pred_check_branch
      %535 = sbr.rel (0) target = $region53
    $region52: #{tpu_custom_call.1} parent=1 // pred_region
      %s537 = ssub.s32 128, 128
      %538 = vsyncadd [#allocation4], %s537
      %s540 = sshll.u32 [#allocation13], 4
      %s541 = int_to_ptr.vmem [resolvable:$true] %s540
      %543 = dma.vmem_to_hbm [thread:$0]  %s541, 128, %s6, [#allocation4]
    $region53: #{tpu_custom_call.1} parent=1 // pred_fallthru
      _
    // Predicated region
    $region54: #{tpu_custom_call.1} parent=1 // pred_check
      _
    $region55: #{tpu_custom_call.1} parent=1 // pred_check_branch
      %545 = sbr.rel (0) target = $region57
    $region56: #{tpu_custom_call.1} parent=1 // pred_region
      %546 = dma.done [#allocation4], 128
    $region57: #{tpu_custom_call.1} parent=1 // pred_fallthru
      _
    %547 = vsyncpa [#allocation3], 1
    %548 = vsyncpa [#allocation6], 1
    %549 = vsyncpa [#allocation9], 1
    %550 = vsyncpa [#allocation12], 1
    %551 = vsyncpa [#allocation4], 1

</llo_original>
